<compile_context>
chip_gen: v5e
topology: v5e:2x2
jax: 0.10.0
libtpu: 0.0.40
codegen_flags: <defaults>
</compile_context>

<pallas_src>
import functools

import jax
import jax.numpy as jnp
import numpy as np
from jax import lax
from jax.experimental import pallas as pl
from jax.experimental.pallas import tpu as pltpu


# ---------------------------------------------------------------------------
# Fused recurrence kernels (whole time loop in one pallas_call, no grid)
# ---------------------------------------------------------------------------

def _seq_tf_kernel(state0_ref, obs_ref, wT_ref, next_ref, obs_sc,
                   *, n_obs, n_steps):
    """Teacher-forced recurrence.

    state0_ref: (1, H)   initial state
    obs_ref   : (T, O)   observations (un-padded)
    wT_ref    : (H, H)   weight_A.T (transposed once in the wrapper)
    next_ref  : (T, H)   per-step next_state output (lane-dense)
    obs_sc    : (T, H)   VMEM scratch holding obs embedded into H lanes
    """
    H = state0_ref.shape[-1]

    # One-time: embed (T, O) observations into the first O lanes of H.
    obs_sc[...] = jnp.zeros_like(obs_sc)
    obs_sc[:, pl.ds(0, n_obs)] = obs_ref[...]

    # Hoisted step-invariant values (JAX does not CSE broadcast_in_dim).
    w_t = wT_ref[...]
    col = lax.broadcasted_iota(jnp.int32, (1, H), 1)
    obs_mask = col < n_obs

    def step(t, state):
        obs_row = obs_sc[pl.ds(t, 1), :]                       # (1, H)
        # r_state = state - ConMat.T @ (obs - ConMat @ state)
        #         = 2*state - obs on observed lanes, state elsewhere.
        r_state = jnp.where(obs_mask, 2.0 * state - obs_row, state)
        # next_state = A(tanh(r_state)) = tanh(r_state) @ W.T
        next_state = jnp.dot(jnp.tanh(r_state), w_t,
                             preferred_element_type=jnp.float32)  # (1, H)
        next_ref[pl.ds(t, 1), :] = next_state
        return next_state

    lax.fori_loop(0, n_steps, step, state0_ref[...], unroll=True)


def _seq_free_kernel(state0_ref, wT_ref, next_ref, *, n_steps):
    """Free-running recurrence (Ide = eye(H) => r_state = state)."""
    w_t = wT_ref[...]

    def step(t, state):
        next_state = jnp.dot(jnp.tanh(state), w_t,
                             preferred_element_type=jnp.float32)  # (1, H)
        next_ref[pl.ds(t, 1), :] = next_state
        return next_state

    lax.fori_loop(0, n_steps, step, state0_ref[...], unroll=True)


# ---------------------------------------------------------------------------
# Python wrappers
# ---------------------------------------------------------------------------

def _vmem_spec():
    return pl.BlockSpec(memory_space=pltpu.MemorySpace.VMEM)


def vanilla_cell_sequence_tf(state0, weight_A, observations):
    """Fused teacher-forced recurrence over T steps in one pallas_call.

    observations: (T, O). Returns (exp_seq (T,O), next_seq (T,H), delta_seq (T,O)),
    identical to calling vanilla_cell.forward T times with chained next_state.
    """
    T, O = observations.shape
    H = state0.shape[-1]
    state2d = state0.reshape(1, H).astype(jnp.float32)
    obs = observations.astype(jnp.float32)
    # One-time transpose outside the hot path (hoist further if called in a loop).
    w_t = jnp.asarray(weight_A, jnp.float32).T

    next_seq = pl.pallas_call(
        functools.partial(_seq_tf_kernel, n_obs=int(O), n_steps=int(T)),
        in_specs=[_vmem_spec(), _vmem_spec(), _vmem_spec()],
        out_specs=_vmem_spec(),
        out_shape=jax.ShapeDtypeStruct((T, H), jnp.float32),
        scratch_shapes=[pltpu.VMEM((T, H), jnp.float32)],
    )(state2d, obs, w_t)

    # expectation_t = (pre-update state_t)[:O]; delta_t = obs_t - expectation_t.
    states_seq = jnp.concatenate([state2d, next_seq[:-1]], axis=0)   # (T, H)
    exp_seq = states_seq[:, :O]
    delta_seq = obs - exp_seq
    return exp_seq, next_seq, delta_seq


def vanilla_cell_sequence_free(state0, weight_A, n_obs, n_steps):
    """Fused free-running (forecast) recurrence over n_steps in one pallas_call."""
    H = state0.shape[-1]
    O = int(n_obs)
    T = int(n_steps)
    state2d = state0.reshape(1, H).astype(jnp.float32)
    w_t = jnp.asarray(weight_A, jnp.float32).T

    next_seq = pl.pallas_call(
        functools.partial(_seq_free_kernel, n_steps=T),
        in_specs=[_vmem_spec(), _vmem_spec()],
        out_specs=_vmem_spec(),
        out_shape=jax.ShapeDtypeStruct((T, H), jnp.float32),
    )(state2d, w_t)

    states_seq = jnp.concatenate([state2d, next_seq[:-1]], axis=0)   # (T, H)
    exp_seq = states_seq[:, :O]
    return exp_seq, next_seq


def vanilla_cell_forward(state, weight_A, n_obs, teacher_forcing, observation=None):
    """Single step; mirrors vanilla_cell.forward exactly.

    Routed through the fused sequence kernel with T=1 (a dedicated single-step
    pallas_call would be pure dispatch overhead).
    state: (H,), observation: (O,). Returns (expectation, next_state, delta|None).
    """
    O = int(n_obs)
    if teacher_forcing:
        if observation is None:
            raise ValueError(
                "`observation` must be provided when `teacher_forcing` is True.")
        exp_seq, next_seq, delta_seq = vanilla_cell_sequence_tf(
            state, weight_A, observation.reshape(1, O))
        return exp_seq[0], next_seq[0], delta_seq[0]
    else:
        exp_seq, next_seq = vanilla_cell_sequence_free(state, weight_A, O, 1)
        return exp_seq[0], next_seq[0], None


# ---------------------------------------------------------------------------
# Pure-JAX reference (explicit ConMat / Ide matmuls, as in the torch module)
# ---------------------------------------------------------------------------

def _ref_cell(state, weight_A, conmat, ide, teacher_forcing, observation=None):
    expectation = conmat @ state
    if teacher_forcing:
        delta = observation - expectation
        r_state = state - conmat.T @ delta
        next_state = jnp.tanh(r_state) @ weight_A.T
        return expectation, next_state, delta
    r_state = ide @ state
    next_state = jnp.tanh(r_state) @ weight_A.T
    return expectation, next_state, None


if __name__ == "__main__":
    n_obs, n_hid_vars, T = 8, 32, 8
    init_range = (-0.75, 0.75)

    key = jax.random.PRNGKey(0)
    k_w, k_s, k_o = jax.random.split(key, 3)

    # CustomLinear(n_hid_vars, n_hid_vars, bias=False) weight, uniform init
    weight_A = jax.random.uniform(k_w, (n_hid_vars, n_hid_vars), jnp.float32,
                                  minval=init_range[0], maxval=init_range[1])
    conmat = jnp.eye(n_obs, n_hid_vars, dtype=jnp.float32)   # fixed buffer in torch
    ide = jnp.eye(n_hid_vars, dtype=jnp.float32)             # fixed buffer in torch

    state = jax.random.normal(k_s, (n_hid_vars,), jnp.float32)
    obs_seq = jax.random.normal(k_o, (T, n_obs), jnp.float32)
    observation = obs_seq[0]

    # ---------------- single step, teacher forcing ----------------
    exp_tf, next_tf, delta_tf = vanilla_cell_forward(
        state, weight_A, n_obs, teacher_forcing=True, observation=observation)
    jax.block_until_ready((exp_tf, next_tf, delta_tf))
    r_exp, r_next, r_delta = _ref_cell(state, weight_A, conmat, ide, True, observation)
    np.testing.assert_allclose(np.asarray(exp_tf), np.asarray(r_exp), rtol=1e-5, atol=1e-5)
    np.testing.assert_allclose(np.asarray(next_tf), np.asarray(r_next), rtol=1e-5, atol=1e-5)
    np.testing.assert_allclose(np.asarray(delta_tf), np.asarray(r_delta), rtol=1e-5, atol=1e-5)

    # ---------------- single step, free running ----------------
    exp_fr, next_fr, _ = vanilla_cell_forward(state, weight_A, n_obs, teacher_forcing=False)
    jax.block_until_ready((exp_fr, next_fr))
    r_exp2, r_next2, _ = _ref_cell(state, weight_A, conmat, ide, False)
    np.testing.assert_allclose(np.asarray(exp_fr), np.asarray(r_exp2), rtol=1e-5, atol=1e-5)
    np.testing.assert_allclose(np.asarray(next_fr), np.asarray(r_next2), rtol=1e-5, atol=1e-5)

    # ---------------- fused teacher-forced sequence ----------------
    exp_seq, next_seq, delta_seq = vanilla_cell_sequence_tf(state, weight_A, obs_seq)
    jax.block_until_ready((exp_seq, next_seq, delta_seq))
    s = state
    for t in range(T):
        re, rn, rd = _ref_cell(s, weight_A, conmat, ide, True, obs_seq[t])
        np.testing.assert_allclose(np.asarray(exp_seq[t]), np.asarray(re), rtol=1e-4, atol=1e-4)
        np.testing.assert_allclose(np.asarray(next_seq[t]), np.asarray(rn), rtol=1e-4, atol=1e-4)
        np.testing.assert_allclose(np.asarray(delta_seq[t]), np.asarray(rd), rtol=1e-4, atol=1e-4)
        s = rn

    # ---------------- fused free-running (forecast) sequence ----------------
    exp_fseq, next_fseq = vanilla_cell_sequence_free(state, weight_A, n_obs, T)
    jax.block_until_ready((exp_fseq, next_fseq))
    s = state
    for t in range(T):
        re, rn, _ = _ref_cell(s, weight_A, conmat, ide, False)
        np.testing.assert_allclose(np.asarray(exp_fseq[t]), np.asarray(re), rtol=1e-4, atol=1e-4)
        np.testing.assert_allclose(np.asarray(next_fseq[t]), np.asarray(rn), rtol=1e-4, atol=1e-4)
        s = rn

    print("KERNEL_OK")
</pallas_src>

<mosaic_0001>
module attributes {stable_mosaic.version = 11 : i64} {
  func.func @_seq_tf_kernel(%arg0: memref<1x32xf32, #tpu.memory_space<vmem>>, %arg1: memref<1x8xf32, #tpu.memory_space<vmem>>, %arg2: memref<32x32xf32, #tpu.memory_space<vmem>>, %arg3: memref<1x32xf32, #tpu.memory_space<vmem>>, %arg4: memref<1x32xf32, #tpu.memory_space<vmem>>) attributes {dimension_semantics = [], scalar_prefetch = 0 : i64, scratch_operands = 1 : i64, tpu.core_type = #tpu.core_type<tc>} {
    %cst = arith.constant 0.000000e+00 : f32
    %0 = vector.broadcast %cst : f32 to vector<1x32xf32>
    %c0 = arith.constant 0 : index
    %c0_0 = arith.constant 0 : index
    %1 = vector.load %arg4[%c0, %c0_0] : memref<1x32xf32, #tpu.memory_space<vmem>>, vector<1x32xf32>
    tpu.vector_store %arg4[%c0, %c0_0], %0 {strides = array<i32>} : memref<1x32xf32, #tpu.memory_space<vmem>>, vector<1x32xf32>,
    %c0_1 = arith.constant 0 : index
    %c0_2 = arith.constant 0 : index
    %2 = vector.load %arg1[%c0_1, %c0_2] : memref<1x8xf32, #tpu.memory_space<vmem>>, vector<1x8xf32>
    %c0_3 = arith.constant 0 : index
    %c0_4 = arith.constant 0 : index
    %3 = vector.load %arg4[%c0_3, %c0_4] : memref<1x32xf32, #tpu.memory_space<vmem>>, vector<1x8xf32>
    tpu.vector_store %arg4[%c0_3, %c0_4], %2 {strides = array<i32>} : memref<1x32xf32, #tpu.memory_space<vmem>>, vector<1x8xf32>,
    %c0_5 = arith.constant 0 : index
    %c0_6 = arith.constant 0 : index
    %4 = vector.load %arg2[%c0_5, %c0_6] : memref<32x32xf32, #tpu.memory_space<vmem>>, vector<32x32xf32>
    %5 = tpu.iota {dimensions = array<i32: 1>} : vector<1x32xi32>
    %c8_i32 = arith.constant 8 : i32
    %6 = vector.broadcast %c8_i32 : i32 to vector<1x32xi32>
    %7 = arith.cmpi slt, %5, %6 : vector<1x32xi32>
    %c0_7 = arith.constant 0 : index
    %c0_8 = arith.constant 0 : index
    %8 = vector.load %arg0[%c0_7, %c0_8] : memref<1x32xf32, #tpu.memory_space<vmem>>, vector<1x32xf32>
    %c0_i32 = arith.constant 0 : i32
    %9 = arith.index_cast %c0_i32 : i32 to index
    %c0_9 = arith.constant 0 : index
    %10 = vector.load %arg4[%9, %c0_9] : memref<1x32xf32, #tpu.memory_space<vmem>>, vector<1x32xf32>
    %cst_10 = arith.constant 2.000000e+00 : f32
    %11 = vector.broadcast %cst_10 : f32 to vector<1x32xf32>
    %12 = arith.mulf %11, %8 : vector<1x32xf32>
    %13 = arith.subf %12, %10 : vector<1x32xf32>
    %14 = arith.select %7, %13, %8 : vector<1x32xi1>, vector<1x32xf32>
    %15 = math.tanh %14 : vector<1x32xf32>
    %cst_11 = arith.constant dense<0.000000e+00> : vector<1x32xf32>
    %16 = tpu.matmul %15, %4, %cst_11 {dimension_numbers = #tpu.dot_dimension_numbers<[1], [0], [0], [1], [0, 0, 1, 1], [], []>} : vector<1x32xf32>, vector<32x32xf32>, vector<1x32xf32> -> vector<1x32xf32>
    %17 = arith.index_cast %c0_i32 : i32 to index
    %c0_12 = arith.constant 0 : index
    %18 = vector.load %arg3[%17, %c0_12] : memref<1x32xf32, #tpu.memory_space<vmem>>, vector<1x32xf32>
    tpu.vector_store %arg3[%17, %c0_12], %16 {strides = array<i32>} : memref<1x32xf32, #tpu.memory_space<vmem>>, vector<1x32xf32>,
    %c1_i32 = arith.constant 1 : i32
    return
  }
}

</mosaic_0001>

<llo_original>
// kernel: tpu_custom_call.1
$region0: #{tpu_custom_call.1}
  #allocation0 [shape = 'u32[]', space=smem, size = 0x4, offset = 0x4, fixed_abs, tag = 'smem constant byte address 0x4 - core index']
  #allocation1 [shape = 'u32[72,128]{1,0:T(1,128)}', space=vmem, size = 0x9000, scoped, tag = 'internal scratch']
  #allocation2 [shape = 'f32[1,32]{1,0:T(1,128)}', space=vmem, size = 0x200, scoped, tag = 'scratch operand']
  %s0 = inlined_call_operand.hbm [shape: f32[1,32], index: 0, kind: input, shape index: {}]
  %s1 = inlined_call_operand.hbm [shape: f32[1,8], index: 1, kind: input, shape index: {}]
  %s2 = inlined_call_operand.hbm [shape: f32[32,32], index: 2, kind: input, shape index: {}]
  %s3 = inlined_call_operand.hbm [shape: f32[1,32], index: 3, kind: output, shape index: {}]
  %s4 = sld [smem:[#allocation0]]
  $region34: #{tpu_custom_call.1} parent=0
    _
  %s6 = ssub.s32 1, %s4
  %s7 = scalar_select 0, %s6, %s4
  $region1: #{tpu_custom_call.1} parent=0
    #allocation3 [shape = 'u8[512]{0}', space=vmem, size = 0x400, scoped, tag = 'input window, operand 0, single buffered']
    #allocation4 [shape = 's32[1]{0}', space=sflag, size = 0x4, scoped, tag = 'scoped memory for tpu_custom_call.1']
    #allocation5 [shape = 's32[1]{0}', space=sflag, size = 0x4, scoped, tag = 'scoped memory for tpu_custom_call.1']
    #allocation6 [shape = 'u8[512]{0}', space=vmem, size = 0x400, scoped, tag = 'input window, operand 1, single buffered']
    #allocation7 [shape = 's32[1]{0}', space=sflag, size = 0x4, scoped, tag = 'scoped memory for tpu_custom_call.1']
    #allocation8 [shape = 'u8[16384]{0}', space=vmem, size = 0x4000, scoped, tag = 'input window, operand 2, single buffered']
    #allocation9 [shape = 'u8[512]{0}', space=vmem, size = 0x400, scoped, tag = 'output window, operand 0, single buffered']
    %8 = vsyncpa [#allocation4], 0
    %9 = vsyncpa [#allocation7], 0
    %10 = vsyncpa [#allocation5], 0
    // Predicated region
    $region2: #{tpu_custom_call.1} parent=1 // pred_check
      _
    $region3: #{tpu_custom_call.1} parent=1 // pred_check_branch
      %12 = sbr.rel (0) target = $region5
    $region4: #{tpu_custom_call.1} parent=1 // pred_region
      %14 = vsyncadd [#allocation4], 0
      %s16 = sshll.u32 %s0, 4
      %s17 = int_to_ptr.hbm [resolvable:$true] %s16
      %s18 = sshll.u32 [#allocation3], 4
      %s19 = int_to_ptr.vmem [resolvable:$true] %s18
      %21 = dma.hbm_to_vmem [thread:$0]  %s17, 16, %s19, [#allocation4]
    $region5: #{tpu_custom_call.1} parent=1 // pred_fallthru
      _
    // Predicated region
    $region6: #{tpu_custom_call.1} parent=1 // pred_check
      _
    $region7: #{tpu_custom_call.1} parent=1 // pred_check_branch
      %23 = sbr.rel (0) target = $region9
    $region8: #{tpu_custom_call.1} parent=1 // pred_region
      %25 = vsyncadd [#allocation7], 0
      %s27 = sshll.u32 %s1, 4
      %s28 = int_to_ptr.hbm [resolvable:$true] %s27
      %s29 = sshll.u32 [#allocation6], 4
      %s30 = int_to_ptr.vmem [resolvable:$true] %s29
      %32 = dma.hbm_to_vmem [thread:$0]  %s28, 16, %s30, [#allocation7]
    $region9: #{tpu_custom_call.1} parent=1 // pred_fallthru
      _
    // Predicated region
    $region10: #{tpu_custom_call.1} parent=1 // pred_check
      _
    $region11: #{tpu_custom_call.1} parent=1 // pred_check_branch
      %34 = sbr.rel (0) target = $region13
    $region12: #{tpu_custom_call.1} parent=1 // pred_region
      %36 = vsyncadd [#allocation7], 0
      %s37 = sshll.u32 %s2, 4
      %s38 = int_to_ptr.hbm [resolvable:$true] %s37
      %s39 = sshll.u32 [#allocation8], 4
      %s40 = int_to_ptr.vmem [resolvable:$true] %s39
      %45 = dma.hbm_to_vmem [thread:$0]  %s38, 512, %s40, [#allocation7], 128, 128, 8
    $region13: #{tpu_custom_call.1} parent=1 // pred_fallthru
      _
    // Predicated region
    $region14: #{tpu_custom_call.1} parent=1 // pred_check
      _
    $region15: #{tpu_custom_call.1} parent=1 // pred_check_branch
      %47 = sbr.rel (0) target = $region17
    $region16: #{tpu_custom_call.1} parent=1 // pred_region
      %49 = dma.done [#allocation4], 16
    $region17: #{tpu_custom_call.1} parent=1 // pred_fallthru
      _
    // Predicated region
    $region18: #{tpu_custom_call.1} parent=1 // pred_check
      _
    $region19: #{tpu_custom_call.1} parent=1 // pred_check_branch
      %51 = sbr.rel (0) target = $region21
    $region20: #{tpu_custom_call.1} parent=1 // pred_region
      %53 = dma.done [#allocation7], 16
    $region21: #{tpu_custom_call.1} parent=1 // pred_fallthru
      _
    // Predicated region
    $region22: #{tpu_custom_call.1} parent=1 // pred_check
      _
    $region23: #{tpu_custom_call.1} parent=1 // pred_check_branch
      %55 = sbr.rel (0) target = $region25
    $region24: #{tpu_custom_call.1} parent=1 // pred_region
      %57 = dma.done [#allocation7], 512
    $region25: #{tpu_custom_call.1} parent=1 // pred_fallthru
      _
    %vm58 = vcmask 253952
    %59 = vst.msk [vmem:[#allocation2] sm:$0x1] %vm58, 0.0
    %v60 = vld [vmem:[#allocation6] sm:$0x1]
    %vm61 = vcmask 57344
    %62 = vst.msk [vmem:[#allocation2] sm:$0x1] %vm61, %v60
    %v63 = vld [vmem:[#allocation8] sm:$0xff]
    %v64 = vld [vmem:[#allocation8 + $0x8] sm:$0xff]
    %v65 = vld [vmem:[#allocation8 + $0x10] sm:$0xff]
    %v66 = vld [vmem:[#allocation8 + $0x18] sm:$0xff]
    %v67 = vlaneseq
    %v68 = vand.u32 %v67, 127
    %vm69 = vcmp.lt.s32.totalorder %v68, 8
    %v70 = vld [vmem:[#allocation3] sm:$0x1]
    %v71 = vld [vmem:[#allocation2] sm:$0x1]
    %v72 = vmul.f32 %v70, 2.0
    %v73 = vsub.f32 %v72, %v71
    %v74 = vsel %vm69, %v73, %v70
    %v75 = vtanh.pop %v74
    %vm76 = vcmask 261120
    %v78 = vsel %vm76, %v75, 0
    %80 = vmatpush.msra.mxu0 0.0
    %81 = vmatpush.msra.mxu0 0.0
    %82 = vmatpush.msra.mxu0 0.0
    %83 = vmatpush.msra.mxu0 0.0
    %84 = vmatpush.msra.mxu0 0.0
    %85 = vmatpush.msra.mxu0 0.0
    %86 = vmatpush.msra.mxu0 0.0
    %87 = vmatpush.msra.mxu0 0.0
    %88 = vmatpush.msra.mxu0 0.0
    %89 = vmatpush.msra.mxu0 0.0
    %90 = vmatpush.msra.mxu0 0.0
    %91 = vmatpush.msra.mxu0 0.0
    %92 = vmatpush.msra.mxu0 %v66
    %93 = vmatpush.msra.mxu0 %v65
    %94 = vmatpush.msra.mxu0 %v64
    %95 = vmatpush.msra.mxu0 %v63
    %96 = vmatmul.f32.gmra.mxu0 %v78
    %v97 = vpop.f32.mrf.mxu0
    %v98 = vadd.f32 0.0, %v97
    %99 = vdwg.mxu0
    %100 = vst.msk [vmem:[#allocation9] sm:$0x1] %vm58, %v98
    // Predicated region
    $region26: #{tpu_custom_call.1} parent=1 // pred_check
      _
    $region27: #{tpu_custom_call.1} parent=1 // pred_check_branch
      %102 = sbr.rel (0) target = $region29
    $region28: #{tpu_custom_call.1} parent=1 // pred_region
      %104 = vsyncadd [#allocation5], 0
      %s106 = sshll.u32 [#allocation9], 4
      %s107 = int_to_ptr.vmem [resolvable:$true] %s106
      %s108 = sshll.u32 %s3, 4
      %s109 = int_to_ptr.hbm [resolvable:$true] %s108
      %111 = dma.vmem_to_hbm [thread:$0]  %s107, 16, %s109, [#allocation5]
    $region29: #{tpu_custom_call.1} parent=1 // pred_fallthru
      _
    // Predicated region
    $region30: #{tpu_custom_call.1} parent=1 // pred_check
      _
    $region31: #{tpu_custom_call.1} parent=1 // pred_check_branch
      %113 = sbr.rel (0) target = $region33
    $region32: #{tpu_custom_call.1} parent=1 // pred_region
      %115 = dma.done [#allocation5], 16
    $region33: #{tpu_custom_call.1} parent=1 // pred_fallthru
      _
    %116 = vsyncpa [#allocation4], 1
    %117 = vsyncpa [#allocation7], 1
    %118 = vsyncpa [#allocation5], 1

</llo_original>
